<compile_context>
chip_gen: v6e
topology: v6e:2x2x1
jax: 0.10.0
libtpu: 0.0.40
codegen_flags: <defaults>
</compile_context>

<pallas_src>
import jax
import jax.numpy as jnp
from jax import lax
from jax.experimental import pallas as pl
from jax.experimental.pallas import tpu as pltpu


# sublane packing per itemsize: f32 -> 8, bf16/f16 -> 16, int8/fp8 -> 32
_SUBLANE = {4: 8, 2: 16, 1: 32}


def _round_up(x, m):
    return ((x + m - 1) // m) * m


def _vmem_capacity_bytes():
    """Per-TensorCore VMEM capacity, clamped per generation."""
    kind = ""
    try:
        kind = jax.devices()[0].device_kind.lower()
    except Exception:
        pass
    # v4/v5e/v5p/v6e have 128 MiB per TC; v7x has 64 MiB per TC.  Unknown ->
    # conservative 64 MiB (also guards a per-chip number being returned).
    if ("v4" in kind) or ("v5" in kind) or ("v6" in kind):
        gen_cap = 128 * 1024 * 1024
    else:
        gen_cap = 64 * 1024 * 1024
    try:
        cap = int(pltpu.get_tpu_info().vmem_capacity_bytes)
    except Exception:
        return gen_cap
    return min(cap, gen_cap)


def _make_rmsnorm_kernel(eps, hidden, needs_lane_mask):
    inv_h = 1.0 / float(hidden)

    def kernel(x_ref, w_ref, o_ref):
        # PyTorch: hidden_states.to(float32); statistics in f32.
        xf = x_ref[...].astype(jnp.float32)                      # (tm, hidden)
        sq = xf * xf
        if needs_lane_mask:
            # hidden is not a multiple of 128: the block's last dim equals the
            # full array dim, so this mask is a logical no-op, but it
            # guarantees padded physical lanes contribute 0 to the reduction.
            lane = lax.broadcasted_iota(jnp.int32, sq.shape, sq.ndim - 1)
            sq = jnp.where(lane < hidden, sq, 0.0)
        var = jnp.sum(sq, axis=-1, keepdims=True) * inv_h        # (tm, 1)
        inv = lax.rsqrt(var + eps)                               # EUP rsqrt
        # Re-read + re-cast after the reduction (keeps the f32 tile live range
        # short).  Cast back to the input dtype BEFORE the weight multiply
        # (exact T5/Qwen3 cast order).
        normed = (x_ref[...].astype(jnp.float32) * inv).astype(x_ref.dtype)
        o_ref[...] = (w_ref[...] * normed).astype(o_ref.dtype)

    return kernel


def t5_rmsnorm(hidden_states, weight, eps=1e-6, *, row_tile=None,
               weight_in_input_dtype=False):
    """RMSNorm over the last axis of `hidden_states` with per-channel `weight`.

    weight_in_input_dtype: opt-in deviation from PyTorch promotion — cast the
    weight to the activation dtype so the output keeps the activation dtype
    (halves store traffic for bf16 activations with an f32 weight).
    """
    orig_shape = hidden_states.shape
    hidden = orig_shape[-1]
    x2d = hidden_states.reshape(-1, hidden)
    rows = x2d.shape[0]

    if weight_in_input_dtype:
        weight = weight.astype(hidden_states.dtype)

    # Output dtype follows PyTorch promotion of `weight * hidden.to(input_dtype)`.
    out_dtype = jnp.promote_types(weight.dtype, hidden_states.dtype)
    in_item = jnp.dtype(hidden_states.dtype).itemsize
    out_item = jnp.dtype(out_dtype).itemsize
    # Stricter of input/output sublane packing so both tiles stay native.
    sublane = max(_SUBLANE.get(in_item, 8), _SUBLANE.get(out_item, 8))

    rows_ceil = _round_up(rows, sublane)
    row_bytes_in = max(hidden * in_item, 1)
    vmem_cap = _vmem_capacity_bytes()

    if row_tile is None:
        # VMEM budget: double-buffered input + output tiles plus one f32
        # working tile, targeting ~half of per-TC VMEM.
        budget = vmem_cap // 2
        per_row = hidden * (2 * in_item + 2 * out_item + 4) + 64
        tm_vmem = max(sublane, (budget // per_row // sublane) * sublane)
        # Bytes-per-step target: ~8 MiB of input per grid step so the ~0.35us
        # fixed per-step overhead stays negligible.
        tm_payload = max(sublane, ((8 << 20) // row_bytes_in // sublane) * sublane)
        tm = min(tm_vmem, tm_payload, rows_ceil)

        # Megacore / pipelining: prefer >= 8 grid steps (>= 3-4 per v7x TC)
        # when rows allow, but never shrink a step below ~1 MiB of input.
        min_steps = 8
        if pl.cdiv(rows, tm) < min_steps:
            cand = _round_up(pl.cdiv(rows_ceil, min_steps), sublane)
            floor_rows = max(
                sublane, ((1 << 20) // row_bytes_in // sublane) * sublane)
            tm = max(min(tm, max(cand, floor_rows)), sublane)
    else:
        tm = min(max(sublane, _round_up(int(row_tile), sublane)), rows_ceil)
        tm = max(tm, sublane)

    grid = pl.cdiv(rows, tm)

    # No padding / slicing: the ragged last row block (if any) reads undefined
    # rows whose stores are masked; the per-row reduction keeps valid rows
    # exact.  hidden is used as the full block extent (legal even when it is
    # not a multiple of 128 because it equals the array dim).
    w2d = weight.reshape(1, hidden)
    needs_lane_mask = (hidden % 128) != 0

    # Scoped-VMEM limit sized to the actual tiles, capped below per-TC VMEM.
    tile_in = tm * hidden * in_item
    tile_out = tm * hidden * out_item
    f32_tmp = tm * hidden * 4 + tm * 8          # one f32 tile + per-row stats
    w_bytes = hidden * jnp.dtype(weight.dtype).itemsize
    needed = 2 * (tile_in + tile_out) + 2 * w_bytes + f32_tmp
    vmem_limit = int(min(max(needed + (4 << 20), 32 << 20),
                         vmem_cap - (2 << 20)))

    out = pl.pallas_call(
        _make_rmsnorm_kernel(eps, hidden, needs_lane_mask),
        out_shape=jax.ShapeDtypeStruct((rows, hidden), out_dtype),
        grid_spec=pltpu.PrefetchScalarGridSpec(
            num_scalar_prefetch=0,
            grid=(grid,),
            in_specs=[
                pl.BlockSpec((tm, hidden), lambda i: (i, 0)),
                pl.BlockSpec((1, hidden), lambda i: (0, 0)),  # weight resident
            ],
            out_specs=pl.BlockSpec((tm, hidden), lambda i: (i, 0)),
        ),
        compiler_params=pltpu.CompilerParams(
            dimension_semantics=("parallel",),
            vmem_limit_bytes=vmem_limit,
        ),
    )(x2d, w2d)

    return out.reshape(orig_shape[:-1] + (hidden,)).astype(out_dtype)


def _ref_rmsnorm(x, w, eps):
    xf = x.astype(jnp.float32)
    var = jnp.mean(xf * xf, axis=-1, keepdims=True)
    return w * (xf * lax.rsqrt(var + eps)).astype(x.dtype)


if __name__ == "__main__":
    key = jax.random.PRNGKey(0)
    eps = 1e-6

    # 1) Small case from the module spec (batch=2, seq=8, hidden=32).
    batch, seq, hidden = 2, 8, 32
    x = jax.random.normal(key, (batch, seq, hidden), dtype=jnp.float32)
    weight = jnp.ones((hidden,), dtype=jnp.float32)
    y = jax.block_until_ready(t5_rmsnorm(x, weight, eps))
    ref = _ref_rmsnorm(x, weight, eps)
    assert y.shape == x.shape and y.dtype == jnp.float32
    assert jnp.allclose(y, ref, atol=1e-5, rtol=1e-5), "mismatch (case 1)"

    # 2) Ragged rows (rows % tile != 0) and ragged hidden (not a multiple of
    #    128): exercises the no-pad / masked-store path.
    k1, k2 = jax.random.split(key)
    x2 = jax.random.normal(k1, (3, 7, 160), dtype=jnp.float32)
    w2 = jax.random.normal(k2, (160,), dtype=jnp.float32) * 0.1 + 1.0
    y2 = jax.block_until_ready(t5_rmsnorm(x2, w2, eps, row_tile=8))
    assert jnp.allclose(y2, _ref_rmsnorm(x2, w2, eps),
                        atol=1e-5, rtol=1e-5), "mismatch (case 2)"

    # 3) bf16 activations with an f32 weight (faithful PyTorch promotion ->
    #    f32 output), checks the cast-before-weight order.
    x3 = jax.random.normal(k2, (2, 8, 256), dtype=jnp.bfloat16)
    w3 = jnp.ones((256,), dtype=jnp.float32)
    y3 = jax.block_until_ready(t5_rmsnorm(x3, w3, eps))
    assert y3.dtype == jnp.float32
    assert jnp.allclose(y3, _ref_rmsnorm(x3, w3, eps).astype(jnp.float32),
                        atol=2e-2, rtol=2e-2), "mismatch (case 3)"

    print("KERNEL_OK")
</pallas_src>

<mosaic_0001>
module attributes {stable_mosaic.version = 11 : i64} {
  func.func @kernel(%arg0: i32, %arg1: memref<16x32xf32, #tpu.memory_space<vmem>>, %arg2: memref<1x32xf32, #tpu.memory_space<vmem>>, %arg3: memref<16x32xf32, #tpu.memory_space<vmem>>) attributes {dimension_semantics = [#tpu.dimension_semantics<parallel>], iteration_bounds = array<i64: 1>, scalar_prefetch = 0 : i64, scratch_operands = 0 : i64, tpu.core_type = #tpu.core_type<tc>, window_params = [{transform_indices = @transform_0, window_bounds = array<i64: 16, 32>}, {pipeline_mode = #tpu.pipeline_mode<synchronous>, transform_indices = @transform_1, window_bounds = array<i64: 1, 32>}, {transform_indices = @transform_2, window_bounds = array<i64: 16, 32>}]} {
    %c0 = arith.constant 0 : index
    %c0_0 = arith.constant 0 : index
    %0 = vector.load %arg1[%c0, %c0_0] : memref<16x32xf32, #tpu.memory_space<vmem>>, vector<16x32xf32>
    %1 = arith.mulf %0, %0 : vector<16x32xf32>
    %2 = tpu.iota {dimensions = array<i32: 1>} : vector<16x32xi32>
    %c32_i32 = arith.constant 32 : i32
    %3 = vector.broadcast %c32_i32 : i32 to vector<16x32xi32>
    %4 = arith.cmpi slt, %2, %3 : vector<16x32xi32>
    %cst = arith.constant 0.000000e+00 : f32
    %5 = vector.broadcast %cst : f32 to vector<16x32xf32>
    %6 = arith.select %4, %1, %5 : vector<16x32xi1>, vector<16x32xf32>
    %cst_1 = arith.constant dense<0.000000e+00> : vector<16xf32>
    %7 = vector.multi_reduction <add>, %6, %cst_1 [1] : vector<16x32xf32> to vector<16xf32>
    %8 = vector.shape_cast %7 : vector<16xf32> to vector<16x1xf32>
    %cst_2 = arith.constant 3.125000e-02 : f32
    %9 = vector.broadcast %cst_2 : f32 to vector<16x1xf32>
    %10 = arith.mulf %8, %9 : vector<16x1xf32>
    %cst_3 = arith.constant 9.99999997E-7 : f32
    %11 = vector.broadcast %cst_3 : f32 to vector<16x1xf32>
    %12 = arith.addf %10, %11 : vector<16x1xf32>
    %13 = math.rsqrt %12 : vector<16x1xf32>
    %c0_4 = arith.constant 0 : index
    %c0_5 = arith.constant 0 : index
    %14 = vector.load %arg1[%c0_4, %c0_5] : memref<16x32xf32, #tpu.memory_space<vmem>>, vector<16x32xf32>
    %15 = vector.broadcast %13 : vector<16x1xf32> to vector<16x32xf32>
    %16 = arith.mulf %14, %15 : vector<16x32xf32>
    %c0_6 = arith.constant 0 : index
    %c0_7 = arith.constant 0 : index
    %17 = vector.load %arg2[%c0_6, %c0_7] : memref<1x32xf32, #tpu.memory_space<vmem>>, vector<1x32xf32>
    %18 = vector.broadcast %17 : vector<1x32xf32> to vector<16x32xf32>
    %19 = arith.mulf %18, %16 : vector<16x32xf32>
    %c0_8 = arith.constant 0 : index
    %c0_9 = arith.constant 0 : index
    %20 = vector.load %arg3[%c0_8, %c0_9] : memref<16x32xf32, #tpu.memory_space<vmem>>, vector<16x32xf32>
    tpu.vector_store %arg3[%c0_8, %c0_9], %19 {strides = array<i32>} : memref<16x32xf32, #tpu.memory_space<vmem>>, vector<16x32xf32>,
    return
  }
  func.func @transform_0(%arg0: i32) -> (i32, i32) {
    %c0_i32 = arith.constant 0 : i32
    %c0_i32_0 = arith.constant 0 : i32
    return %arg0, %c0_i32 : i32, i32
  }
  func.func @transform_1(%arg0: i32) -> (i32, i32) {
    %c0_i32 = arith.constant 0 : i32
    %c0_i32_0 = arith.constant 0 : i32
    %c0_i32_1 = arith.constant 0 : i32
    return %c0_i32, %c0_i32_0 : i32, i32
  }
  func.func @transform_2(%arg0: i32) -> (i32, i32) {
    %c0_i32 = arith.constant 0 : i32
    %c0_i32_0 = arith.constant 0 : i32
    return %arg0, %c0_i32 : i32, i32
  }
}

</mosaic_0001>

<llo_original>
// kernel: tpu_custom_call.1
$region0: #{tpu_custom_call.1}
  #allocation0 [shape = 'u32[]', space=smem, size = 0x4, offset = 0x4, fixed_abs, tag = 'smem constant byte address 0x4 - core index']
  #allocation1 [shape = 'u32[144,128]{1,0:T(1,128)}', space=vmem, size = 0x12000, scoped, tag = 'internal scratch']
  %s0 = inlined_call_operand.hbm [shape: f32[16,32], index: 0, kind: input, shape index: {}]
  %s1 = inlined_call_operand.vmem [shape: f32[1,32], index: 1, kind: input, shape index: {}]
  %s2 = inlined_call_operand.hbm [shape: f32[16,32], index: 2, kind: output, shape index: {}]
  %s3 = sld [smem:[#allocation0]]
  $region22: #{tpu_custom_call.1} parent=0
    _
  %s5 = ssub.s32 1, %s3
  %s6 = scalar_select 0, %s5, %s3
  $region1: #{tpu_custom_call.1} parent=0
    #allocation2 [shape = 'u8[8192]{0}', space=vmem, size = 0x2000, scoped, tag = 'input window, operand 0, single buffered']
    #allocation3 [shape = 's32[1]{0}', space=sflag, size = 0x4, scoped, tag = 'scoped memory for tpu_custom_call.1']
    #allocation4 [shape = 's32[1]{0}', space=sflag, size = 0x4, scoped, tag = 'scoped memory for tpu_custom_call.1']
    #allocation5 [shape = 'u8[8192]{0}', space=vmem, size = 0x2000, scoped, tag = 'output window, operand 0, single buffered']
    %7 = vsyncpa [#allocation3], 0
    %8 = vsyncpa [#allocation4], 0
    // Predicated region
    $region2: #{tpu_custom_call.1} parent=1 // pred_check
      _
    $region3: #{tpu_custom_call.1} parent=1 // pred_check_branch
      %10 = sbr.rel (0) target = $region5
    $region4: #{tpu_custom_call.1} parent=1 // pred_region
      %s12 = ssub.s32 256, 256
      %13 = vsyncadd [#allocation3], %s12
      %s14 = sshll.u32 [#allocation2], 4
      %s15 = int_to_ptr.vmem [resolvable:$true] %s14
      %20 = dma.hbm_to_vmem [thread:$0]  %s0, 256, %s15, [#allocation3], 128, 128, 8
    $region5: #{tpu_custom_call.1} parent=1 // pred_fallthru
      _
    // Predicated region
    $region6: #{tpu_custom_call.1} parent=1 // pred_check
      _
    $region7: #{tpu_custom_call.1} parent=1 // pred_check_branch
      %22 = sbr.rel (0) target = $region9
    $region8: #{tpu_custom_call.1} parent=1 // pred_region
      _
    $region9: #{tpu_custom_call.1} parent=1 // pred_fallthru
      _
    // Predicated region
    $region10: #{tpu_custom_call.1} parent=1 // pred_check
      _
    $region11: #{tpu_custom_call.1} parent=1 // pred_check_branch
      %24 = sbr.rel (0) target = $region13
    $region12: #{tpu_custom_call.1} parent=1 // pred_region
      %25 = dma.done [#allocation3], 256
    $region13: #{tpu_custom_call.1} parent=1 // pred_fallthru
      _
    %v26 = vld [vmem:[#allocation2] sm:$0xff]
    %v27 = vld [vmem:[#allocation2 + $0x8] sm:$0xff]
    %v28 = vmul.f32 %v26, %v26
    %v29 = vmul.f32 %v27, %v27
    %v30 = vlaneseq
    %v31 = vand.u32 %v30, 127
    %vm32 = vcmp.lt.s32.totalorder %v31, 32
    %v33 = vsel %vm32, %v28, 0.0
    %v34 = vsel %vm32, %v29, 0.0
    %vm35 = vcmask 261120
    %v36 = vsel %vm35, %v33, 0.0
    %37 = vadd.xlane.f32.xlu0 %v36
    %v38 = vpop.xlane.xlu0 %37
    %v39 = vsel %vm35, %v34, 0.0
    %40 = vadd.xlane.f32.xlu0 %v39
    %v41 = vpop.xlane.xlu0 %40
    %v42 = vmul.f32 %v38, 0.03125
    %v43 = vmul.f32 %v41, 0.03125
    %v44 = vadd.f32 %v42, 1e-06
    %v45 = vadd.f32 %v43, 1e-06
    %v46 = vrsqrt.pop %v44
    %v47 = vrsqrt.pop %v45
    %v48 = vmul.f32 %v26, %v46
    %v49 = vmul.f32 %v27, %v47
    %v50 = vld [vmem:[%s1] sm:$0x1]
    %v52 = vlaneseq
    %v53 = vshrl.u32 %v52, 7
    %v54 = vsub.s32 0, %v53
    %v55 = vrot.slane %v50, %v54
    %v57 = vmul.f32 %v55, %v48
    %v58 = vmul.f32 %v55, %v49
    %59 = vst.msk [vmem:[#allocation5] sm:$0xff] %vm35, %v57
    %60 = vst.msk [vmem:[#allocation5 + $0x8] sm:$0xff] %vm35, %v58
    // Predicated region
    $region14: #{tpu_custom_call.1} parent=1 // pred_check
      _
    $region15: #{tpu_custom_call.1} parent=1 // pred_check_branch
      %62 = sbr.rel (0) target = $region17
    $region16: #{tpu_custom_call.1} parent=1 // pred_region
      %s64 = ssub.s32 256, 256
      %65 = vsyncadd [#allocation4], %s64
      %s66 = sshll.u32 [#allocation5], 4
      %s67 = int_to_ptr.vmem [resolvable:$true] %s66
      %72 = dma.vmem_to_hbm [thread:$0]  %s67, 256, %s2, [#allocation4], 128, 128, 8
    $region17: #{tpu_custom_call.1} parent=1 // pred_fallthru
      _
    // Predicated region
    $region18: #{tpu_custom_call.1} parent=1 // pred_check
      _
    $region19: #{tpu_custom_call.1} parent=1 // pred_check_branch
      %74 = sbr.rel (0) target = $region21
    $region20: #{tpu_custom_call.1} parent=1 // pred_region
      %75 = dma.done [#allocation4], 256
    $region21: #{tpu_custom_call.1} parent=1 // pred_fallthru
      _
    %76 = vsyncpa [#allocation3], 1
    %77 = vsyncpa [#allocation4], 1

</llo_original>
